<compile_context>
chip_gen: v7x
topology: tpu7x:2x2x1
jax: 0.10.0
libtpu: 0.0.40
codegen_flags: <defaults>
</compile_context>

<pallas_src>
import math
import functools

import jax
import jax.numpy as jnp
from jax import lax
from jax.experimental import pallas as pl
from jax.experimental.pallas import tpu as pltpu


def _round_up(a, b):
    return (a + b - 1) // b * b


def _arcface_kernel(xn_ref, y_ref, wn_ref, loss_ref,
                    m_sc, l_sc, t_sc, *,
                    cos_m, sin_m, th, mm, scale, num_classes, tile_c):
    """One (row-tile, class-tile) step of the ArcFace cross-entropy.

    xn_ref : (TN, D)  bf16  pre-L2-normalized features (row tile)
    y_ref  : (TN, 1)  int32 labels
    wn_ref : (TC, D)  bf16  pre-L2-normalized weight (class tile)
    loss_ref: (TN, 1) f32   per-row CE loss (written on last class tile)
    scratch: m/l/t (TN, 1) f32 online-softmax state (max, sum-exp, target logit)
    """
    c = pl.program_id(1)
    last_c = pl.num_programs(1) - 1

    @pl.when(c == 0)
    def _init():
        m_sc[...] = jnp.full_like(m_sc, -1e30)
        l_sc[...] = jnp.zeros_like(l_sc)
        t_sc[...] = jnp.zeros_like(t_sc)

    # cosine tile (TN, TC): NT matmul on the MXU, bf16 inputs, f32 accumulation.
    cosine = lax.dot_general(
        xn_ref[...], wn_ref[...],
        dimension_numbers=(((1,), (1,)), ((), ())),
        preferred_element_type=jnp.float32)

    # Shift the label by the class-tile offset (a (TN,1) scalar op) instead of
    # shifting the full-tile iota.
    y_local = y_ref[...] - c * tile_c                              # (TN, 1)
    col = lax.broadcasted_iota(jnp.int32, cosine.shape, 1)         # (TN, TC)
    is_tgt = col == y_local                                        # (TN, TC)

    # Target cosine per row (one masked reduction -> (TN,1)); the row has a
    # target in this class tile iff 0 <= y_local < tile_c.
    tgt_cos = jnp.sum(jnp.where(is_tgt, cosine, 0.0), axis=1, keepdims=True)
    has_tgt = jnp.logical_and(y_local >= 0, y_local < tile_c)      # (TN, 1)

    # ArcFace margin on the (TN,1) target vector only — not on the full tile.
    sine_r = jnp.sqrt(jnp.maximum(1.0 - tgt_cos * tgt_cos, 0.0))
    phi_r = tgt_cos * cos_m - sine_r * sin_m
    phi_r = jnp.where(tgt_cos > th, phi_r, tgt_cos - mm)

    # Predicated one-hot blend (broadcast of the (TN,1) phi vector).
    logit = jnp.where(is_tgt, phi_r, cosine) * scale               # (TN, TC)
    if num_classes % tile_c != 0:
        # Mask padded class columns out of the logsumexp (only the last class
        # tile has any); compare the local iota against a scalar bound.
        logit = jnp.where(col < num_classes - c * tile_c, logit, -1e30)

    # Online (flash-style) logsumexp.
    m_prev = m_sc[...]
    m_new = jnp.maximum(m_prev, jnp.max(logit, axis=1, keepdims=True))
    alpha = jnp.exp(m_prev - m_new)
    l_sc[...] = alpha * l_sc[...] + jnp.sum(jnp.exp(logit - m_new),
                                            axis=1, keepdims=True)
    m_sc[...] = m_new
    # Target-logit accumulation is now a (TN,1) op, not a full-tile reduction.
    t_sc[...] = t_sc[...] + jnp.where(has_tgt, phi_r * scale, 0.0)

    @pl.when(c == last_c)
    def _finalize():
        # per-row cross entropy: logsumexp(logit) - logit[target]
        loss_ref[...] = m_sc[...] + jnp.log(l_sc[...]) - t_sc[...]


def arcface_per_row_loss(x, y, w, *, scale_factor, margin,
                         tile_n=256, tile_c=2048):
    """Per-row ArcFace cross-entropy. x:(N,D), y:(N,) int, w:(C,D).

    Returns the (N,) vector of per-row losses (reduction='none').

    Default tiles tile_n=256 / tile_c=2048 amortize the per-row-tile weight
    stream (the main DMA cost) and fill the 256-wide MXU on v6e/v7x.  The
    scoped-VMEM limit is set explicitly because the v5e default is only
    16 MiB and v7x has only 64 MiB of physical VMEM.
    """
    N, D = x.shape
    C, D2 = w.shape
    assert D == D2

    # --- L2 normalizations hoisted out of the kernel (done ONCE, in f32) ---
    w_f32 = w.astype(jnp.float32)
    w_n = (w_f32 * lax.rsqrt(
        jnp.maximum(jnp.sum(w_f32 * w_f32, axis=1, keepdims=True), 1e-24))
    ).astype(jnp.bfloat16)
    x_f32 = x.astype(jnp.float32)
    x_n = (x_f32 * lax.rsqrt(
        jnp.maximum(jnp.sum(x_f32 * x_f32, axis=1, keepdims=True), 1e-24))
    ).astype(jnp.bfloat16)

    # --- clamp tiles (16-row granularity for bf16 sublane packing) ---
    n_al = _round_up(N, 16)
    tile_n = max(16, min((int(tile_n) // 16) * 16, n_al))
    if n_al // tile_n < 2 and n_al >= 32:
        # Guarantee >= 2 row tiles so the "parallel" axis can shard across
        # v7x's two TensorCores even for small bank+batch sizes.
        tile_n = max(16, ((n_al // 2) // 16) * 16)
    n_pad = _round_up(N, tile_n)

    c_al = _round_up(C, 128)
    tile_c = max(128, min((int(tile_c) // 128) * 128, c_al))
    c_pad = _round_up(C, tile_c)

    # --- zero-pad rows / classes to tile multiples ---
    x_p = jnp.pad(x_n, ((0, n_pad - N), (0, 0)))
    y_p = jnp.pad(y.astype(jnp.int32), (0, n_pad - N)).reshape(n_pad, 1)
    w_p = jnp.pad(w_n, ((0, c_pad - C), (0, 0)))

    kernel = functools.partial(
        _arcface_kernel,
        cos_m=math.cos(margin), sin_m=math.sin(margin),
        th=math.cos(math.pi - margin), mm=math.sin(math.pi - margin) * margin,
        scale=scale_factor, num_classes=C, tile_c=tile_c)

    # Explicit scoped-VMEM budget: double-buffered bf16 streams + live f32
    # full-tile temporaries, with 2x headroom, clamped to [32 MiB, 56 MiB]
    # (56 MiB stays under v7x's 64 MiB physical VMEM).
    w_bytes = 2 * tile_c * D * 2
    x_bytes = 2 * tile_n * D * 2
    tmp_bytes = 8 * tile_n * tile_c * 4
    est = w_bytes + x_bytes + tmp_bytes + (2 << 20)
    vmem_limit = int(min(max(2 * est, 32 << 20), 56 << 20))

    per_row = pl.pallas_call(
        kernel,
        out_shape=jax.ShapeDtypeStruct((n_pad, 1), jnp.float32),
        grid_spec=pltpu.PrefetchScalarGridSpec(
            num_scalar_prefetch=0,
            grid=(n_pad // tile_n, c_pad // tile_c),
            in_specs=[
                pl.BlockSpec((tile_n, D), lambda i, c: (i, 0)),  # normalized x
                pl.BlockSpec((tile_n, 1), lambda i, c: (i, 0)),  # labels
                pl.BlockSpec((tile_c, D), lambda i, c: (c, 0)),  # normalized w
            ],
            out_specs=pl.BlockSpec((tile_n, 1), lambda i, c: (i, 0)),
            scratch_shapes=[
                pltpu.VMEM((tile_n, 1), jnp.float32),   # running max
                pltpu.VMEM((tile_n, 1), jnp.float32),   # running sum-exp
                pltpu.VMEM((tile_n, 1), jnp.float32),   # target logit
            ]),
        compiler_params=pltpu.CompilerParams(
            dimension_semantics=("parallel", "arbitrary"),
            vmem_limit_bytes=vmem_limit),
    )(x_p, y_p, w_p)

    return per_row[:N, 0]


def broadface_forward(x, label, weight, feature_mb, label_mb, proxy_mb, *,
                      scale_factor=64.0, margin=0.5, compensate=False,
                      tile_n=256, tile_c=2048):
    """Forward pass of BroadFace: batch ArcFace loss + broad (bank+batch) loss."""
    # memory-bank bookkeeping (cheap glue, plain JAX)
    weight_now = weight[label_mb]
    delta_weight = weight_now - proxy_mb
    if compensate:
        feat_norm = jnp.sqrt(jnp.sum(feature_mb * feature_mb, axis=1, keepdims=True))
        proxy_norm = jnp.sqrt(jnp.sum(proxy_mb * proxy_mb, axis=1, keepdims=True))
        update_feature_mb = feature_mb + (feat_norm / proxy_norm) * delta_weight
    else:
        update_feature_mb = feature_mb

    bank = feature_mb.shape[0]
    batch = x.shape[0]

    large_input = jnp.concatenate([update_feature_mb, x], axis=0)
    large_label = jnp.concatenate(
        [label_mb.astype(jnp.int32), label.astype(jnp.int32)], axis=0)

    # Fused pass: the batch rows are the tail of large_input, so the batch
    # loss is just the mean over the tail slice of the broad per-row losses
    # (identical weight, identical rows -> identical forward values).
    per_row = arcface_per_row_loss(large_input, large_label, weight,
                                   scale_factor=scale_factor, margin=margin,
                                   tile_n=tile_n, tile_c=tile_c)
    broad_loss = jnp.mean(per_row)
    batch_loss = jnp.mean(per_row[bank:bank + batch])
    return batch_loss + broad_loss


def _arcface_ref(x, y, w, scale_factor, margin):
    """Pure-JAX f32 reference of BroadFace.compute_arcface (mean CE)."""
    xn = x / jnp.maximum(jnp.linalg.norm(x, axis=1, keepdims=True), 1e-12)
    wn = w / jnp.maximum(jnp.linalg.norm(w, axis=1, keepdims=True), 1e-12)
    cosine = xn @ wn.T
    sine = jnp.sqrt(jnp.clip(1.0 - cosine * cosine, 0.0, None))
    phi = cosine * math.cos(margin) - sine * math.sin(margin)
    phi = jnp.where(cosine > math.cos(math.pi - margin), phi,
                    cosine - math.sin(math.pi - margin) * margin)
    one_hot = jax.nn.one_hot(y, w.shape[0], dtype=cosine.dtype)
    logit = (one_hot * phi + (1.0 - one_hot) * cosine) * scale_factor
    lse = jax.scipy.special.logsumexp(logit, axis=1)
    tgt = jnp.take_along_axis(logit, y[:, None], axis=1)[:, 0]
    return jnp.mean(lse - tgt)


if __name__ == "__main__":
    # small, deterministic setup
    in_features = 32      # D
    out_features = 128    # C (number of identities)
    batch = 8             # B
    bank = 8              # populated memory-bank size (queue_size conceptually 10000)

    key = jax.random.PRNGKey(0)
    k_w, k_x, k_y, k_fmb, k_lmb = jax.random.split(key, 5)

    # xavier_uniform_ for weight (out_features, in_features)
    bound = math.sqrt(6.0 / (in_features + out_features))
    weight = jax.random.uniform(
        k_w, (out_features, in_features), jnp.float32, minval=-bound, maxval=bound)

    x = jax.random.normal(k_x, (batch, in_features), jnp.float32)
    label = jax.random.randint(k_y, (batch,), 0, out_features, jnp.int32)

    # deterministic, plausibly-populated memory banks
    feature_mb = jax.random.normal(k_fmb, (bank, in_features), jnp.float32)
    label_mb = jax.random.randint(k_lmb, (bank,), 0, out_features, jnp.int32)
    proxy_mb = weight[label_mb]  # proxies recorded at enqueue time

    loss = broadface_forward(
        x, label, weight, feature_mb, label_mb, proxy_mb,
        scale_factor=64.0, margin=0.5, compensate=False)
    loss = jax.block_until_ready(loss)
    assert bool(jnp.isfinite(loss))

    # f32 pure-JAX reference (generous tolerance: kernel uses bf16 streams)
    large_x = jnp.concatenate([feature_mb, x], axis=0)
    large_y = jnp.concatenate([label_mb, label], axis=0)
    ref = (_arcface_ref(x, label, weight, 64.0, 0.5)
           + _arcface_ref(large_x, large_y, weight, 64.0, 0.5))
    assert abs(float(loss) - float(ref)) < 1.0 + 0.02 * abs(float(ref)), (
        float(loss), float(ref))

    print("KERNEL_OK")
</pallas_src>

<mosaic_0001>
module attributes {stable_mosaic.version = 11 : i64} {
  func.func @_arcface_kernel(%arg0: i32, %arg1: i32, %arg2: memref<16x32xbf16, #tpu.memory_space<vmem>>, %arg3: memref<16x1xi32, #tpu.memory_space<vmem>>, %arg4: memref<128x32xbf16, #tpu.memory_space<vmem>>, %arg5: memref<16x1xf32, #tpu.memory_space<vmem>>, %arg6: memref<16x1xf32, #tpu.memory_space<vmem>>, %arg7: memref<16x1xf32, #tpu.memory_space<vmem>>, %arg8: memref<16x1xf32, #tpu.memory_space<vmem>>) attributes {dimension_semantics = [#tpu.dimension_semantics<parallel>, #tpu.dimension_semantics<arbitrary>], iteration_bounds = array<i64: 1, 1>, scalar_prefetch = 0 : i64, scratch_operands = 3 : i64, tpu.core_type = #tpu.core_type<tc>, window_params = [{transform_indices = @transform_0, window_bounds = array<i64: 16, 32>}, {transform_indices = @transform_1, window_bounds = array<i64: 16, 1>}, {transform_indices = @transform_2, window_bounds = array<i64: 128, 32>}, {transform_indices = @transform_3, window_bounds = array<i64: 16, 1>}]} {
    %c0_i32 = arith.constant 0 : i32
    %0 = arith.cmpi eq, %arg1, %c0_i32 : i32
    %1 = arith.extui %0 : i1 to i32
    %c0_i32_0 = arith.constant 0 : i32
    %2 = arith.cmpi ne, %1, %c0_i32_0 : i32
    scf.if %2 {
      %cst_35 = arith.constant -1.000000e+30 : f32
      %69 = vector.broadcast %cst_35 : f32 to vector<16x1xf32>
      %c0_36 = arith.constant 0 : index
      %c0_37 = arith.constant 0 : index
      %70 = vector.load %arg6[%c0_36, %c0_37] : memref<16x1xf32, #tpu.memory_space<vmem>>, vector<16x1xf32>
      tpu.vector_store %arg6[%c0_36, %c0_37], %69 {strides = array<i32>} : memref<16x1xf32, #tpu.memory_space<vmem>>, vector<16x1xf32>,
      %cst_38 = arith.constant 0.000000e+00 : f32
      %71 = vector.broadcast %cst_38 : f32 to vector<16x1xf32>
      %c0_39 = arith.constant 0 : index
      %c0_40 = arith.constant 0 : index
      %72 = vector.load %arg7[%c0_39, %c0_40] : memref<16x1xf32, #tpu.memory_space<vmem>>, vector<16x1xf32>
      tpu.vector_store %arg7[%c0_39, %c0_40], %71 {strides = array<i32>} : memref<16x1xf32, #tpu.memory_space<vmem>>, vector<16x1xf32>,
      %cst_41 = arith.constant 0.000000e+00 : f32
      %73 = vector.broadcast %cst_41 : f32 to vector<16x1xf32>
      %c0_42 = arith.constant 0 : index
      %c0_43 = arith.constant 0 : index
      %74 = vector.load %arg8[%c0_42, %c0_43] : memref<16x1xf32, #tpu.memory_space<vmem>>, vector<16x1xf32>
      tpu.vector_store %arg8[%c0_42, %c0_43], %73 {strides = array<i32>} : memref<16x1xf32, #tpu.memory_space<vmem>>, vector<16x1xf32>,
    } else {
    }
    %c0 = arith.constant 0 : index
    %c0_1 = arith.constant 0 : index
    %3 = vector.load %arg2[%c0, %c0_1] : memref<16x32xbf16, #tpu.memory_space<vmem>>, vector<16x32xbf16>
    %c0_2 = arith.constant 0 : index
    %c0_3 = arith.constant 0 : index
    %4 = vector.load %arg4[%c0_2, %c0_3] : memref<128x32xbf16, #tpu.memory_space<vmem>>, vector<128x32xbf16>
    %cst = arith.constant dense<0.000000e+00> : vector<16x128xf32>
    %5 = tpu.matmul %3, %4, %cst {dimension_numbers = #tpu.dot_dimension_numbers<[1], [1], [0], [0], [0, 0, 1, 0], [], []>} : vector<16x32xbf16>, vector<128x32xbf16>, vector<16x128xf32> -> vector<16x128xf32>
    %c0_4 = arith.constant 0 : index
    %c0_5 = arith.constant 0 : index
    %6 = vector.load %arg3[%c0_4, %c0_5] : memref<16x1xi32, #tpu.memory_space<vmem>>, vector<16x1xi32>
    %c128_i32 = arith.constant 128 : i32
    %7 = arith.muli %arg1, %c128_i32 : i32
    %8 = vector.broadcast %7 : i32 to vector<16x1xi32>
    %9 = arith.subi %6, %8 : vector<16x1xi32>
    %10 = tpu.iota {dimensions = array<i32: 1>} : vector<16x128xi32>
    %11 = vector.broadcast %9 : vector<16x1xi32> to vector<16x128xi32>
    %12 = arith.cmpi eq, %10, %11 : vector<16x128xi32>
    %cst_6 = arith.constant 0.000000e+00 : f32
    %13 = vector.broadcast %cst_6 : f32 to vector<16x128xf32>
    %14 = arith.select %12, %5, %13 : vector<16x128xi1>, vector<16x128xf32>
    %cst_7 = arith.constant dense<0.000000e+00> : vector<16xf32>
    %15 = vector.multi_reduction <add>, %14, %cst_7 [1] : vector<16x128xf32> to vector<16xf32>
    %16 = vector.shape_cast %15 : vector<16xf32> to vector<16x1xf32>
    %c0_i32_8 = arith.constant 0 : i32
    %17 = vector.broadcast %c0_i32_8 : i32 to vector<16x1xi32>
    %18 = arith.cmpi sge, %9, %17 : vector<16x1xi32>
    %c128_i32_9 = arith.constant 128 : i32
    %19 = vector.broadcast %c128_i32_9 : i32 to vector<16x1xi32>
    %20 = arith.cmpi slt, %9, %19 : vector<16x1xi32>
    %21 = arith.andi %18, %20 : vector<16x1xi1>
    %22 = arith.mulf %16, %16 : vector<16x1xf32>
    %cst_10 = arith.constant 1.000000e+00 : f32
    %23 = vector.broadcast %cst_10 : f32 to vector<16x1xf32>
    %24 = arith.subf %23, %22 : vector<16x1xf32>
    %cst_11 = arith.constant 0.000000e+00 : f32
    %25 = vector.broadcast %cst_11 : f32 to vector<16x1xf32>
    %26 = arith.maximumf %24, %25 : vector<16x1xf32>
    %27 = math.sqrt %26 : vector<16x1xf32>
    %cst_12 = arith.constant 0.87758255 : f32
    %28 = vector.broadcast %cst_12 : f32 to vector<16x1xf32>
    %29 = arith.mulf %16, %28 : vector<16x1xf32>
    %cst_13 = arith.constant 0.47942555 : f32
    %30 = vector.broadcast %cst_13 : f32 to vector<16x1xf32>
    %31 = arith.mulf %27, %30 : vector<16x1xf32>
    %32 = arith.subf %29, %31 : vector<16x1xf32>
    %cst_14 = arith.constant -0.87758255 : f32
    %33 = vector.broadcast %cst_14 : f32 to vector<16x1xf32>
    %34 = arith.cmpf ogt, %16, %33 : vector<16x1xf32>
    %cst_15 = arith.constant 0.239712775 : f32
    %35 = vector.broadcast %cst_15 : f32 to vector<16x1xf32>
    %36 = arith.subf %16, %35 : vector<16x1xf32>
    %37 = arith.select %34, %32, %36 : vector<16x1xi1>, vector<16x1xf32>
    %38 = vector.shape_cast %37 : vector<16x1xf32> to vector<16x1xf32>
    %39 = vector.broadcast %38 : vector<16x1xf32> to vector<16x128xf32>
    %40 = arith.select %12, %39, %5 : vector<16x128xi1>, vector<16x128xf32>
    %cst_16 = arith.constant 6.400000e+01 : f32
    %41 = vector.broadcast %cst_16 : f32 to vector<16x128xf32>
    %42 = arith.mulf %40, %41 : vector<16x128xf32>
    %c0_17 = arith.constant 0 : index
    %c0_18 = arith.constant 0 : index
    %43 = vector.load %arg6[%c0_17, %c0_18] : memref<16x1xf32, #tpu.memory_space<vmem>>, vector<16x1xf32>
    %cst_19 = arith.constant dense<0xFF800000> : vector<16xf32>
    %44 = vector.multi_reduction <maximumf>, %42, %cst_19 [1] : vector<16x128xf32> to vector<16xf32>
    %45 = vector.shape_cast %44 : vector<16xf32> to vector<16x1xf32>
    %46 = arith.maximumf %43, %45 : vector<16x1xf32>
    %47 = arith.subf %43, %46 : vector<16x1xf32>
    %48 = math.exp %47 : vector<16x1xf32>
    %c0_20 = arith.constant 0 : index
    %c0_21 = arith.constant 0 : index
    %49 = vector.load %arg7[%c0_20, %c0_21] : memref<16x1xf32, #tpu.memory_space<vmem>>, vector<16x1xf32>
    %50 = arith.mulf %48, %49 : vector<16x1xf32>
    %51 = vector.broadcast %46 : vector<16x1xf32> to vector<16x128xf32>
    %52 = arith.subf %42, %51 : vector<16x128xf32>
    %53 = math.exp %52 : vector<16x128xf32>
    %cst_22 = arith.constant dense<0.000000e+00> : vector<16xf32>
    %54 = vector.multi_reduction <add>, %53, %cst_22 [1] : vector<16x128xf32> to vector<16xf32>
    %55 = vector.shape_cast %54 : vector<16xf32> to vector<16x1xf32>
    %56 = arith.addf %50, %55 : vector<16x1xf32>
    %c0_23 = arith.constant 0 : index
    %c0_24 = arith.constant 0 : index
    %57 = vector.load %arg7[%c0_23, %c0_24] : memref<16x1xf32, #tpu.memory_space<vmem>>, vector<16x1xf32>
    tpu.vector_store %arg7[%c0_23, %c0_24], %56 {strides = array<i32>} : memref<16x1xf32, #tpu.memory_space<vmem>>, vector<16x1xf32>,
    %c0_25 = arith.constant 0 : index
    %c0_26 = arith.constant 0 : index
    %58 = vector.load %arg6[%c0_25, %c0_26] : memref<16x1xf32, #tpu.memory_space<vmem>>, vector<16x1xf32>
    tpu.vector_store %arg6[%c0_25, %c0_26], %46 {strides = array<i32>} : memref<16x1xf32, #tpu.memory_space<vmem>>, vector<16x1xf32>,
    %c0_27 = arith.constant 0 : index
    %c0_28 = arith.constant 0 : index
    %59 = vector.load %arg8[%c0_27, %c0_28] : memref<16x1xf32, #tpu.memory_space<vmem>>, vector<16x1xf32>
    %cst_29 = arith.constant 6.400000e+01 : f32
    %60 = vector.broadcast %cst_29 : f32 to vector<16x1xf32>
    %61 = arith.mulf %37, %60 : vector<16x1xf32>
    %cst_30 = arith.constant 0.000000e+00 : f32
    %62 = vector.broadcast %cst_30 : f32 to vector<16x1xf32>
    %63 = arith.select %21, %61, %62 : vector<16x1xi1>, vector<16x1xf32>
    %64 = arith.addf %59, %63 : vector<16x1xf32>
    %c0_31 = arith.constant 0 : index
    %c0_32 = arith.constant 0 : index
    %65 = vector.load %arg8[%c0_31, %c0_32] : memref<16x1xf32, #tpu.memory_space<vmem>>, vector<16x1xf32>
    tpu.vector_store %arg8[%c0_31, %c0_32], %64 {strides = array<i32>} : memref<16x1xf32, #tpu.memory_space<vmem>>, vector<16x1xf32>,
    %c0_i32_33 = arith.constant 0 : i32
    %66 = arith.cmpi eq, %arg1, %c0_i32_33 : i32
    %67 = arith.extui %66 : i1 to i32
    %c0_i32_34 = arith.constant 0 : i32
    %68 = arith.cmpi ne, %67, %c0_i32_34 : i32
    scf.if %68 {
      %c0_35 = arith.constant 0 : index
      %c0_36 = arith.constant 0 : index
      %69 = vector.load %arg6[%c0_35, %c0_36] : memref<16x1xf32, #tpu.memory_space<vmem>>, vector<16x1xf32>
      %c0_37 = arith.constant 0 : index
      %c0_38 = arith.constant 0 : index
      %70 = vector.load %arg7[%c0_37, %c0_38] : memref<16x1xf32, #tpu.memory_space<vmem>>, vector<16x1xf32>
      %71 = math.log %70 : vector<16x1xf32>
      %72 = arith.addf %69, %71 : vector<16x1xf32>
      %c0_39 = arith.constant 0 : index
      %c0_40 = arith.constant 0 : index
      %73 = vector.load %arg8[%c0_39, %c0_40] : memref<16x1xf32, #tpu.memory_space<vmem>>, vector<16x1xf32>
      %74 = arith.subf %72, %73 : vector<16x1xf32>
      %c0_41 = arith.constant 0 : index
      %c0_42 = arith.constant 0 : index
      %75 = vector.load %arg5[%c0_41, %c0_42] : memref<16x1xf32, #tpu.memory_space<vmem>>, vector<16x1xf32>
      tpu.vector_store %arg5[%c0_41, %c0_42], %74 {strides = array<i32>} : memref<16x1xf32, #tpu.memory_space<vmem>>, vector<16x1xf32>,
    } else {
    }
    return
  }
  func.func @transform_0(%arg0: i32, %arg1: i32) -> (i32, i32) {
    %c0_i32 = arith.constant 0 : i32
    %c0_i32_0 = arith.constant 0 : i32
    return %arg0, %c0_i32 : i32, i32
  }
  func.func @transform_1(%arg0: i32, %arg1: i32) -> (i32, i32) {
    %c0_i32 = arith.constant 0 : i32
    %c0_i32_0 = arith.constant 0 : i32
    return %arg0, %c0_i32 : i32, i32
  }
  func.func @transform_2(%arg0: i32, %arg1: i32) -> (i32, i32) {
    %c0_i32 = arith.constant 0 : i32
    %c0_i32_0 = arith.constant 0 : i32
    return %arg1, %c0_i32 : i32, i32
  }
  func.func @transform_3(%arg0: i32, %arg1: i32) -> (i32, i32) {
    %c0_i32 = arith.constant 0 : i32
    %c0_i32_0 = arith.constant 0 : i32
    return %arg0, %c0_i32 : i32, i32
  }
}

</mosaic_0001>

<llo_original>
// kernel: tpu_custom_call.1
$region0: #{tpu_custom_call.1}
  #allocation0 [shape = 'u32[]', space=smem, size = 0x4, offset = 0x4, fixed_abs, tag = 'smem constant byte address 0x4 - core index']
  #allocation1 [shape = 'u32[144,128]{1,0:T(1,128)}', space=vmem, size = 0x12000, scoped, tag = 'internal scratch']
  #allocation2 [shape = 'f32[16,1]{1,0:T(8,128)}', space=vmem, size = 0x2000, scoped, tag = 'scratch operand']
  #allocation3 [shape = 'f32[16,1]{1,0:T(8,128)}', space=vmem, size = 0x2000, scoped, tag = 'scratch operand']
  #allocation4 [shape = 'f32[16,1]{1,0:T(8,128)}', space=vmem, size = 0x2000, scoped, tag = 'scratch operand']
  %s0 = inlined_call_operand.vmem [shape: bf16[16,32], index: 0, kind: input, shape index: {}]
  %s1 = inlined_call_operand.vmem [shape: s32[16,1], index: 1, kind: input, shape index: {}]
  %s2 = inlined_call_operand.vmem [shape: bf16[128,32], index: 2, kind: input, shape index: {}]
  %s3 = inlined_call_operand.vmem [shape: f32[16,1], index: 3, kind: output, shape index: {}]
  %s4 = sld [smem:[#allocation0]]
  $region30: #{tpu_custom_call.1} parent=0
    _
  %s6 = ssub.s32 1, %s4
  %s7 = scalar_select 0, %s6, %s4
  // Predicated region
  $region2: #{tpu_custom_call.1} parent=0 // pred_check
    _
  $region3: #{tpu_custom_call.1} parent=0 // pred_check_branch
    %9 = sbr.rel (0) target = $region5
  $region4: #{tpu_custom_call.1} parent=0 // pred_region
    _
  $region5: #{tpu_custom_call.1} parent=0 // pred_fallthru
    _
  // Predicated region
  $region6: #{tpu_custom_call.1} parent=0 // pred_check
    _
  $region7: #{tpu_custom_call.1} parent=0 // pred_check_branch
    %11 = sbr.rel (0) target = $region9
  $region8: #{tpu_custom_call.1} parent=0 // pred_region
    _
  $region9: #{tpu_custom_call.1} parent=0 // pred_fallthru
    _
  // Predicated region
  $region10: #{tpu_custom_call.1} parent=0 // pred_check
    _
  $region11: #{tpu_custom_call.1} parent=0 // pred_check_branch
    %13 = sbr.rel (0) target = $region13
  $region12: #{tpu_custom_call.1} parent=0 // pred_region
    _
  $region13: #{tpu_custom_call.1} parent=0 // pred_fallthru
    _
  %p15 = scmp.eq.s32.totalorder 0, 0
  // Predicated region
  $region14: #{tpu_custom_call.1} parent=0 // pred_check
    %p16 = pneg %p15
  $region15: #{tpu_custom_call.1} parent=0 // pred_check_branch
    %18 = sbr.rel (%p16) target = $region17
  $region16: #{tpu_custom_call.1} parent=0 // pred_region
    %vm19 = vcmask 7168
    %20 = vst.msk [vmem:[#allocation2] sm:$0xff] %vm19, -1e+30
    %21 = vst.msk [vmem:[#allocation2 + $0x8] sm:$0xff] %vm19, -1e+30
    %22 = vst.msk [vmem:[#allocation3] sm:$0xff] %vm19, 0.0
    %23 = vst.msk [vmem:[#allocation3 + $0x8] sm:$0xff] %vm19, 0.0
    %24 = vst.msk [vmem:[#allocation4] sm:$0xff] %vm19, 0.0
    %25 = vst.msk [vmem:[#allocation4 + $0x8] sm:$0xff] %vm19, 0.0
  $region17: #{tpu_custom_call.1} parent=0 // pred_fallthru
    _
  %v26 = vld [vmem:[%s0] sm:$0xf]
  %v27 = vld [vmem:[%s0 + $0x4] sm:$0xf]
  %v28 = vld [vmem:[%s2] sm:$0xf]
  %v29 = vld [vmem:[%s2 + $0x4] sm:$0xf]
  %v30 = vld [vmem:[%s2 + $0x8] sm:$0xf]
  %v31 = vld [vmem:[%s2 + $0xc] sm:$0xf]
  %v32 = vld [vmem:[%s2 + $0x10] sm:$0xf]
  %v33 = vld [vmem:[%s2 + $0x14] sm:$0xf]
  %v34 = vld [vmem:[%s2 + $0x18] sm:$0xf]
  %v35 = vld [vmem:[%s2 + $0x1c] sm:$0xf]
  %v36 = vld [vmem:[%s2 + $0x20] sm:$0xf]
  %v37 = vld [vmem:[%s2 + $0x24] sm:$0xf]
  %v38 = vld [vmem:[%s2 + $0x28] sm:$0xf]
  %v39 = vld [vmem:[%s2 + $0x2c] sm:$0xf]
  %v40 = vld [vmem:[%s2 + $0x30] sm:$0xf]
  %v41 = vld [vmem:[%s2 + $0x34] sm:$0xf]
  %v42 = vld [vmem:[%s2 + $0x38] sm:$0xf]
  %v43 = vld [vmem:[%s2 + $0x3c] sm:$0xf]
  %v46 = vunpack.c.l.b16 %v26
  %v47 = vunpack.c.l.b16 %v27
  %v48 = vpack.c.b16 %v47, %v46
  %v65 = vunpack.c.l.b16 %v28
  %v66 = vunpack.c.l.b16 %v29
  %v67 = vunpack.c.l.b16 %v30
  %v68 = vunpack.c.l.b16 %v31
  %v69 = vunpack.c.l.b16 %v32
  %v70 = vunpack.c.l.b16 %v33
  %v71 = vunpack.c.l.b16 %v34
  %v72 = vunpack.c.l.b16 %v35
  %v73 = vunpack.c.l.b16 %v36
  %v74 = vunpack.c.l.b16 %v37
  %v75 = vunpack.c.l.b16 %v38
  %v76 = vunpack.c.l.b16 %v39
  %v77 = vunpack.c.l.b16 %v40
  %v78 = vunpack.c.l.b16 %v41
  %v79 = vunpack.c.l.b16 %v42
  %v80 = vunpack.c.l.b16 %v43
  %v81 = vpack.c.b16 %v66, %v65
  %v82 = vpack.c.b16 %v68, %v67
  %v83 = vpack.c.b16 %v70, %v69
  %v84 = vpack.c.b16 %v72, %v71
  %v85 = vpack.c.b16 %v74, %v73
  %v86 = vpack.c.b16 %v76, %v75
  %v87 = vpack.c.b16 %v78, %v77
  %v88 = vpack.c.b16 %v80, %v79
  %vm89 = vcmask 261120
  %v91 = vsel %vm89, %v48, 0
  %v94 = vsel %vm89, %v81, 0
  %v97 = vsel %vm89, %v82, 0
  %v100 = vsel %vm89, %v83, 0
  %v103 = vsel %vm89, %v84, 0
  %v106 = vsel %vm89, %v85, 0
  %v109 = vsel %vm89, %v86, 0
  %v112 = vsel %vm89, %v87, 0
  %v115 = vsel %vm89, %v88, 0
  %117 = vmatprep.subr.bf16.mxu0 0
  %118 = vmatpush1.bf16.xpose.msra.mxu0 %v94
  %119 = vmatprep.subr.bf16.mxu0 0
  %120 = vmatpush1.bf16.xpose.msra.mxu0 %v97
  %121 = vmatprep.subr.bf16.mxu0 0
  %122 = vmatpush1.bf16.xpose.msra.mxu0 %v100
  %123 = vmatprep.subr.bf16.mxu0 0
  %124 = vmatpush1.bf16.xpose.msra.mxu0 %v103
  %125 = vmatprep.subr.bf16.mxu0 0
  %126 = vmatpush1.bf16.xpose.msra.mxu0 %v106
  %127 = vmatprep.subr.bf16.mxu0 0
  %128 = vmatpush1.bf16.xpose.msra.mxu0 %v109
  %129 = vmatprep.subr.bf16.mxu0 0
  %130 = vmatpush1.bf16.xpose.msra.mxu0 %v112
  %131 = vmatprep.subr.bf16.mxu0 0
  %132 = vmatpush1.bf16.xpose.msra.mxu0 %v115
  %133 = vmatprep.subr.bf16.mxu0 0
  %134 = vmatpush1.bf16.xpose.msra.mxu0 0
  %135 = vmatprep.subr.bf16.mxu0 0
  %136 = vmatpush1.bf16.xpose.msra.mxu0 0
  %137 = vmatprep.subr.bf16.mxu0 0
  %138 = vmatpush1.bf16.xpose.msra.mxu0 0
  %139 = vmatprep.subr.bf16.mxu0 0
  %140 = vmatpush1.bf16.xpose.msra.mxu0 0
  %141 = vmatprep.subr.bf16.mxu0 0
  %142 = vmatpush1.bf16.xpose.msra.mxu0 0
  %143 = vmatprep.subr.bf16.mxu0 0
  %144 = vmatpush1.bf16.xpose.msra.mxu0 0
  %145 = vmatprep.subr.bf16.mxu0 0
  %146 = vmatpush1.bf16.xpose.msra.mxu0 0
  %147 = vmatprep.subr.bf16.mxu0 0
  %148 = vmatpush1.bf16.xpose.msra.mxu0 0
  %149 = vmatprep.mubr.bf16.mxu0 0
  %150 = vmatmul.mubr.bf16.gmra.mrb[0].mxu0 %v91
  %v151 = vpop.f32.mrb[0].mxu0
  %v152 = vadd.f32 0.0, %v151
  %v153 = vpop.f32.mrb[0].mxu0
  %v154 = vpop.f32.mrb[0].mxu0
  %v155 = vadd.f32 0.0, %v154
  %v156 = vpop.f32.mrb[0].mxu0
  %157 = vdwg.mxu0
  %v158 = vld [vmem:[%s1] sm:$0xff]
  %v159 = vld [vmem:[%s1 + $0x8] sm:$0xff]
  %s160 = smul.u32 0, 128
  %v161 = vstv %s160
  %v162 = vsub.s32 %v158, %v161
  %v163 = vsub.s32 %v159, %v161
  %v164 = vlaneseq
  %v165 = vand.u32 %v164, 127
  %166 = vset.pattern.permute.xlu0 0
  %167 = vperm.xlu0 %166, %v162
  %v168 = vpop.permute.xlu0 %167
  %169 = vset.pattern.permute.xlu0 0
  %170 = vperm.xlu0 %169, %v163
  %v171 = vpop.permute.xlu0 %170
  %vm172 = vcmp.eq.s32.totalorder %v165, %v168
  %vm173 = vcmp.eq.s32.totalorder %v165, %v171
  %v174 = vsel %vm172, %v152, 0.0
  %v175 = vsel %vm173, %v155, 0.0
  %176 = vadd.xlane.f32.xlu0 %v174
  %v177 = vpop.xlane.xlu0 %176
  %178 = vadd.xlane.f32.xlu0 %v175
  %v179 = vpop.xlane.xlu0 %178
  %vm180 = vcmp.ge.s32.totalorder %v162, 0
  %vm181 = vcmp.ge.s32.totalorder %v163, 0
  %vm182 = vcmp.lt.s32.totalorder %v162, 128
  %vm183 = vcmp.lt.s32.totalorder %v163, 128
  %vm184 = vmand %vm180, %vm182
  %vm185 = vmand %vm181, %vm183
  %v186 = vmul.f32 %v177, %v177
  %v187 = vmul.f32 %v179, %v179
  %v188 = vsub.f32 1.0, %v186
  %v189 = vsub.f32 1.0, %v187
  %v190 = vmax.f32 %v188, 0.0
  %v191 = vmax.f32 %v189, 0.0
  %v192 = vrsqrt.pop %v190
  %v193 = vmul.f32 %v190, %v192
  %vm194 = vcmp.eq.f32.partialorder %v190, inf
  %v195 = vsel %vm194, %v190, %v193
  %vm196 = vcmp.eq.f32.partialorder %v190, 0.0
  %v197 = vand.u32 %v190, 2147483648
  %v198 = vsel %vm196, %v197, %v195
  %v199 = vrsqrt.pop %v191
  %v200 = vmul.f32 %v191, %v199
  %vm201 = vcmp.eq.f32.partialorder %v191, inf
  %v202 = vsel %vm201, %v191, %v200
  %vm203 = vcmp.eq.f32.partialorder %v191, 0.0
  %v204 = vand.u32 %v191, 2147483648
  %v205 = vsel %vm203, %v204, %v202
  %v206 = vmul.f32 %v177, 0.87758255
  %v207 = vmul.f32 %v179, 0.87758255
  %v208 = vmul.f32 %v198, 0.47942555
  %v209 = vmul.f32 %v205, 0.47942555
  %v210 = vsub.f32 %v206, %v208
  %v211 = vsub.f32 %v207, %v209
  %vm212 = vcmp.gt.f32.partialorder %v177, -0.87758255
  %vm213 = vcmp.gt.f32.partialorder %v179, -0.87758255
  %v214 = vsub.f32 %v177, 0.23971277
  %v215 = vsub.f32 %v179, 0.23971277
  %v216 = vsel %vm212, %v210, %v214
  %v217 = vsel %vm213, %v211, %v215
  %v218 = vsel %vm172, %v216, %v152
  %v219 = vsel %vm173, %v217, %v155
  %v220 = vmul.f32 %v218, 64.0
  %v221 = vmul.f32 %v219, 64.0
  %v222 = vld [vmem:[#allocation2] sm:$0xff]
  %v223 = vld [vmem:[#allocation2 + $0x8] sm:$0xff]
  %224 = vmax.xlane.f32.xlu0 %v220
  %v225 = vpop.xlane.xlu0 %224
  %226 = vmax.xlane.f32.xlu0 %v221
  %v227 = vpop.xlane.xlu0 %226
  %v228 = vmax.f32 %v222, %v225
  %v229 = vmax.f32 %v223, %v227
  %v230 = vsub.f32 %v222, %v228
  %v231 = vsub.f32 %v223, %v229
  %v232 = vmul.f32 %v230, 1.442695
  %v233 = vpow.pop %v232
  %v234 = vmul.f32 %v231, 1.442695
  %v235 = vpow.pop %v234
  %v236 = vld [vmem:[#allocation3] sm:$0xff]
  %v237 = vld [vmem:[#allocation3 + $0x8] sm:$0xff]
  %v238 = vmul.f32 %v233, %v236
  %v239 = vmul.f32 %v235, %v237
  %241 = vset.pattern.permute.xlu0 0
  %242 = vperm.xlu0 %241, %v228
  %v243 = vpop.permute.xlu0 %242
  %246 = vset.pattern.permute.xlu0 0
  %247 = vperm.xlu0 %246, %v229
  %v248 = vpop.permute.xlu0 %247
  %v250 = vsub.f32 %v220, %v243
  %v251 = vsub.f32 %v221, %v248
  %v252 = vmul.f32 %v250, 1.442695
  %v253 = vpow.pop %v252
  %v254 = vmul.f32 %v251, 1.442695
  %v255 = vpow.pop %v254
  %256 = vadd.xlane.f32.xlu0 %v253
  %v257 = vpop.xlane.xlu0 %256
  %258 = vadd.xlane.f32.xlu0 %v255
  %v259 = vpop.xlane.xlu0 %258
  %v260 = vadd.f32 %v238, %v257
  %v261 = vadd.f32 %v239, %v259
  %vm262 = vcmask 7168
  %263 = vst.msk [vmem:[#allocation3] sm:$0xff] %vm262, %v260
  %264 = vst.msk [vmem:[#allocation3 + $0x8] sm:$0xff] %vm262, %v261
  %265 = vst.msk [vmem:[#allocation2] sm:$0xff] %vm262, %v228
  %266 = vst.msk [vmem:[#allocation2 + $0x8] sm:$0xff] %vm262, %v229
  %v267 = vld [vmem:[#allocation4] sm:$0xff]
  %v268 = vld [vmem:[#allocation4 + $0x8] sm:$0xff]
  %v269 = vmul.f32 %v216, 64.0
  %v270 = vmul.f32 %v217, 64.0
  %v271 = vsel %vm184, %v269, 0.0
  %v272 = vsel %vm185, %v270, 0.0
  %v273 = vadd.f32 %v267, %v271
  %v274 = vadd.f32 %v268, %v272
  %275 = vst.msk [vmem:[#allocation4] sm:$0xff] %vm262, %v273
  %276 = vst.msk [vmem:[#allocation4 + $0x8] sm:$0xff] %vm262, %v274
  // Predicated region
  $region18: #{tpu_custom_call.1} parent=0 // pred_check
    %p277 = pneg %p15
  $region19: #{tpu_custom_call.1} parent=0 // pred_check_branch
    %279 = sbr.rel (%p277) target = $region21
  $region20: #{tpu_custom_call.1} parent=0 // pred_region
    %v280 = vld [vmem:[#allocation2] sm:$0xff]
    %v281 = vld [vmem:[#allocation2 + $0x8] sm:$0xff]
    %v282 = vld [vmem:[#allocation3] sm:$0xff]
    %v283 = vld [vmem:[#allocation3 + $0x8] sm:$0xff]
    %v284 = vlog2.pop %v282
    %v285 = vmul.f32 %v284, 0.6931472
    %v286 = vlog2.pop %v283
    %v287 = vmul.f32 %v286, 0.6931472
    %v288 = vadd.f32 %v280, %v285
    %v289 = vadd.f32 %v281, %v287
    %v290 = vld [vmem:[#allocation4] sm:$0xff]
    %v291 = vld [vmem:[#allocation4 + $0x8] sm:$0xff]
    %v292 = vsub.f32 %v288, %v290
    %v293 = vsub.f32 %v289, %v291
    %294 = vst.msk [vmem:[%s3] sm:$0xff] %vm262, %v292
    %295 = vst.msk [vmem:[%s3 + $0x8] sm:$0xff] %vm262, %v293
  $region21: #{tpu_custom_call.1} parent=0 // pred_fallthru
    _
  // Predicated region
  $region22: #{tpu_custom_call.1} parent=0 // pred_check
    _
  $region23: #{tpu_custom_call.1} parent=0 // pred_check_branch
    %297 = sbr.rel (0) target = $region25
  $region24: #{tpu_custom_call.1} parent=0 // pred_region
    _
  $region25: #{tpu_custom_call.1} parent=0 // pred_fallthru
    _
  // Predicated region
  $region26: #{tpu_custom_call.1} parent=0 // pred_check
    _
  $region27: #{tpu_custom_call.1} parent=0 // pred_check_branch
    %299 = sbr.rel (0) target = $region29
  $region28: #{tpu_custom_call.1} parent=0 // pred_region
    _
  $region29: #{tpu_custom_call.1} parent=0 // pred_fallthru
    _

</llo_original>
